<compile_context>
chip_gen: v5e
topology: v5e:2x2
jax: 0.10.0
libtpu: 0.0.40
codegen_flags: <defaults>
</compile_context>

<pallas_src>
import math

import jax
import jax.numpy as jnp
from jax import lax
from jax.experimental import pallas as pl
from jax.experimental.pallas import tpu as pltpu


def positional_encoding_2d(x_len, y_len, channels_org):
    """Standard PositionalEncoding2D (interleaved sin/cos) -> (x_len, y_len, channels_org)."""
    channels = int(math.ceil(channels_org / 4) * 2)
    inv_freq = 1.0 / (10000.0 ** (jnp.arange(0, channels, 2, dtype=jnp.float32) / channels))
    pos_x = jnp.arange(x_len, dtype=jnp.float32)
    pos_y = jnp.arange(y_len, dtype=jnp.float32)
    sin_x = pos_x[:, None] * inv_freq[None, :]
    sin_y = pos_y[:, None] * inv_freq[None, :]
    emb_x = jnp.stack([jnp.sin(sin_x), jnp.cos(sin_x)], axis=-1).reshape(x_len, channels)
    emb_y = jnp.stack([jnp.sin(sin_y), jnp.cos(sin_y)], axis=-1).reshape(y_len, channels)
    emb = jnp.concatenate(
        [jnp.broadcast_to(emb_x[:, None, :], (x_len, y_len, channels)),
         jnp.broadcast_to(emb_y[None, :, :], (x_len, y_len, channels))],
        axis=-1)
    return emb[:, :, :channels_org]


def _round_up(n, m):
    return ((n + m - 1) // m) * m


def _patch_proj_kernel(x_ref, w_ref, add_ref, o_ref):
    # x_ref:   (tr, patch)  bf16   -- tr rows = (variate, patch-index) pairs
    # w_ref:   (patch, D)   bf16   -- resident (constant index map)
    # add_ref: (tr, D)      f32    -- bias + 2D positional encoding (pre-folded)
    # o_ref:   (tr, D)      f32
    # One MXU matmul (M=tr, K=patch, N=D) with f32 accumulation, one VPU add,
    # one full-block (lane-dense when D % 128 == 0) store.
    r = jnp.dot(x_ref[...], w_ref[...], preferred_element_type=jnp.float32)
    o_ref[...] = (r + add_ref[...]).astype(o_ref.dtype)


def data_embedding_patching_projection(x, x_mark, weight, bias, *, patch_size,
                                        row_tile=None):
    """x: [B,L,N], x_mark: [B,L,C] or None, weight: [D, patch_size], bias: [D].

    Returns [B, (N+C)*n_patches, D], matching the PyTorch module in eval mode.
    """
    B, L, N = x.shape
    D, psz = weight.shape
    assert psz == patch_size and patch_size >= 2 and L >= patch_size
    stride = patch_size // 2
    n_patches = (L - patch_size) // stride + 1
    C = 0 if x_mark is None else x_mark.shape[2]
    V = N + C
    R = V * n_patches                       # output rows per batch element

    f32, bf16 = jnp.float32, jnp.bfloat16

    # ---- host-side reorg of the TINY input (~patch/D of the output bytes) ----
    xp = jnp.transpose(x, (0, 2, 1))                                   # (B, N, L)
    if x_mark is not None:
        xp = jnp.concatenate([xp, jnp.transpose(x_mark, (0, 2, 1))], axis=1)  # (B,V,L)
    idx = (jnp.arange(n_patches)[:, None] * stride
           + jnp.arange(patch_size)[None, :])                          # (nP, patch)
    x_unf = xp[:, :, idx]                                              # (B, V, nP, patch)
    x_unf = x_unf.reshape(B, R, patch_size).astype(bf16)               # bf16 MXU operand

    w_t = weight.astype(bf16).T                                        # (patch, D) bf16

    # bias + 2D positional encoding folded into one f32 additive table whose row
    # ordering (v*n_patches + p) matches the final output layout.
    pe = positional_encoding_2d(V, n_patches, D)                       # (V, nP, D)
    addend = (pe + bias.astype(f32)[None, None, :]).reshape(R, D)

    # ---- tiling ---------------------------------------------------------------
    # Row tile = MXU M dim = output sublane rows.  Target ~2 MiB f32 output block
    # (fits v5e's 16 MiB / v7x's 32 MiB default scoped VMEM with double-buffering).
    if row_tile is None:
        tr_cap = max(8, ((2 * 1024 * 1024) // (4 * D)) // 8 * 8)
        tr = min(tr_cap, _round_up(R, 8))
    else:
        tr = max(8, _round_up(int(row_tile), 8))
    nj = pl.cdiv(R, tr)
    # v7x has 2 TensorCores: make sure the parallel grid has >= 2 steps if we can.
    if nj * B < 2 and tr > 8:
        tr = max(8, _round_up(pl.cdiv(R, 2), 8))
        nj = pl.cdiv(R, tr)
    grid = (nj, B)        # row tiles outer -> addend block resident across batch

    cost = pl.CostEstimate(
        flops=2 * B * R * patch_size * D,
        transcendentals=0,
        bytes_accessed=(2 * B * R * patch_size       # x_unf (bf16)
                        + 2 * patch_size * D         # weight (bf16, read once)
                        + 4 * R * D                  # addend (f32, read once)
                        + 4 * B * R * D),            # output (f32 write)
    )
    compiler_params = pltpu.CompilerParams(
        dimension_semantics=("parallel", "parallel"),
        vmem_limit_bytes=32 * 1024 * 1024,
    )

    # Note: output last dim is D; when D % 128 != 0 the stores become masked
    # (still correct, just slower).  Usual embed dims (128/256/512) are lane-dense.
    out = pl.pallas_call(
        _patch_proj_kernel,
        out_shape=jax.ShapeDtypeStruct((B, R, D), f32),
        grid_spec=pltpu.PrefetchScalarGridSpec(
            num_scalar_prefetch=0,
            grid=grid,
            in_specs=[
                pl.BlockSpec((None, tr, patch_size), lambda j, i: (i, j, 0)),
                pl.BlockSpec((patch_size, D), lambda j, i: (0, 0)),
                pl.BlockSpec((tr, D), lambda j, i: (j, 0)),
            ],
            out_specs=pl.BlockSpec((None, tr, D), lambda j, i: (i, j, 0)),
        ),
        compiler_params=compiler_params,
        cost_estimate=cost,
    )(x_unf, w_t, addend)

    return out            # already [B, V*n_patches, D]


if __name__ == "__main__":
    # Small shapes: batch=2, seq_len=16, variates=4, mark channels=4,
    # patch_size=8 (stride 4 -> 3 patches), embed_dim=128 (lane-dense output).
    B, L, N, C = 2, 16, 4, 4
    patch_size, D = 8, 128
    stride = patch_size // 2
    n_patches = (L - patch_size) // stride + 1
    V = N + C

    key = jax.random.PRNGKey(0)
    k_x, k_m, k_w, k_b = jax.random.split(key, 4)
    x = jax.random.normal(k_x, (B, L, N), dtype=jnp.float32)
    x_mark = jax.random.normal(k_m, (B, L, C), dtype=jnp.float32)

    # nn.Linear-style init: U(-1/sqrt(inner_dim), 1/sqrt(inner_dim)), inner_dim = patch_size
    bound = 1.0 / (patch_size ** 0.5)
    weight = jax.random.uniform(k_w, (D, patch_size), minval=-bound, maxval=bound,
                                dtype=jnp.float32)
    bias = jax.random.uniform(k_b, (D,), minval=-bound, maxval=bound,
                              dtype=jnp.float32)

    out = data_embedding_patching_projection(x, x_mark, weight, bias,
                                             patch_size=patch_size)
    out = jax.block_until_ready(out)

    # Plain-JAX f32 reference mirroring the PyTorch forward (eval mode).
    xp = jnp.concatenate([jnp.transpose(x, (0, 2, 1)),
                          jnp.transpose(x_mark, (0, 2, 1))], axis=1)          # (B,V,L)
    idx = jnp.arange(n_patches)[:, None] * stride + jnp.arange(patch_size)[None, :]
    patches = xp[:, :, idx]                                                   # (B,V,nP,patch)
    proj = jnp.einsum("bvpk,dk->bvpd", patches, weight,
                      precision=jax.lax.Precision.HIGHEST) + bias
    ref = (proj + positional_encoding_2d(V, n_patches, D)[None]).reshape(
        B, V * n_patches, D)

    assert out.shape == (B, V * n_patches, D), out.shape
    # bf16 MXU operands (f32 accumulation) -> relaxed tolerance vs the f32 reference.
    assert jnp.allclose(out, ref, atol=5e-2, rtol=5e-2), float(
        jnp.max(jnp.abs(out - ref)))
    print("KERNEL_OK")
</pallas_src>

<mosaic_0001>
module attributes {stable_mosaic.version = 11 : i64} {
  func.func @_patch_proj_kernel(%arg0: i32, %arg1: i32, %arg2: memref<1x24x8xbf16, #tpu.memory_space<vmem>>, %arg3: memref<8x128xbf16, #tpu.memory_space<vmem>>, %arg4: memref<24x128xf32, #tpu.memory_space<vmem>>, %arg5: memref<1x24x128xf32, #tpu.memory_space<vmem>>) attributes {dimension_semantics = [#tpu.dimension_semantics<parallel>, #tpu.dimension_semantics<parallel>], iteration_bounds = array<i64: 1, 2>, scalar_prefetch = 0 : i64, scratch_operands = 0 : i64, tpu.core_type = #tpu.core_type<tc>, window_params = [{transform_indices = @transform_0, window_bounds = array<i64: 1, 24, 8>}, {pipeline_mode = #tpu.pipeline_mode<synchronous>, transform_indices = @transform_1, window_bounds = array<i64: 8, 128>}, {transform_indices = @transform_2, window_bounds = array<i64: 24, 128>}, {transform_indices = @transform_3, window_bounds = array<i64: 1, 24, 128>}]} {
    %c0 = arith.constant 0 : index
    %c0_0 = arith.constant 0 : index
    %c0_1 = arith.constant 0 : index
    %0 = vector.load %arg2[%c0, %c0_0, %c0_1] : memref<1x24x8xbf16, #tpu.memory_space<vmem>>, vector<1x24x8xbf16>
    %1 = vector.shape_cast %0 : vector<1x24x8xbf16> to vector<24x8xbf16>
    %c0_2 = arith.constant 0 : index
    %c0_3 = arith.constant 0 : index
    %2 = vector.load %arg3[%c0_2, %c0_3] : memref<8x128xbf16, #tpu.memory_space<vmem>>, vector<8x128xbf16>
    %cst = arith.constant dense<0.000000e+00> : vector<24x128xf32>
    %3 = tpu.matmul %1, %2, %cst {dimension_numbers = #tpu.dot_dimension_numbers<[1], [0], [0], [1], [0, 0, 1, 1], [], []>} : vector<24x8xbf16>, vector<8x128xbf16>, vector<24x128xf32> -> vector<24x128xf32>
    %c0_4 = arith.constant 0 : index
    %c0_5 = arith.constant 0 : index
    %4 = vector.load %arg4[%c0_4, %c0_5] : memref<24x128xf32, #tpu.memory_space<vmem>>, vector<24x128xf32>
    %5 = arith.addf %3, %4 : vector<24x128xf32>
    %c0_6 = arith.constant 0 : index
    %c0_7 = arith.constant 0 : index
    %c0_8 = arith.constant 0 : index
    %6 = vector.load %arg5[%c0_6, %c0_7, %c0_8] : memref<1x24x128xf32, #tpu.memory_space<vmem>>, vector<1x24x128xf32>
    %7 = vector.shape_cast %6 : vector<1x24x128xf32> to vector<24x128xf32>
    %8 = vector.shape_cast %5 : vector<24x128xf32> to vector<1x24x128xf32>
    tpu.vector_store %arg5[%c0_6, %c0_7, %c0_8], %8 {strides = array<i32>} : memref<1x24x128xf32, #tpu.memory_space<vmem>>, vector<1x24x128xf32>,
    return
  }
  func.func @transform_0(%arg0: i32, %arg1: i32) -> (i32, i32, i32) {
    %c0_i32 = arith.constant 0 : i32
    %c0_i32_0 = arith.constant 0 : i32
    return %arg1, %arg0, %c0_i32 : i32, i32, i32
  }
  func.func @transform_1(%arg0: i32, %arg1: i32) -> (i32, i32) {
    %c0_i32 = arith.constant 0 : i32
    %c0_i32_0 = arith.constant 0 : i32
    %c0_i32_1 = arith.constant 0 : i32
    return %c0_i32, %c0_i32_0 : i32, i32
  }
  func.func @transform_2(%arg0: i32, %arg1: i32) -> (i32, i32) {
    %c0_i32 = arith.constant 0 : i32
    %c0_i32_0 = arith.constant 0 : i32
    return %arg0, %c0_i32 : i32, i32
  }
  func.func @transform_3(%arg0: i32, %arg1: i32) -> (i32, i32, i32) {
    %c0_i32 = arith.constant 0 : i32
    %c0_i32_0 = arith.constant 0 : i32
    return %arg1, %arg0, %c0_i32 : i32, i32, i32
  }
}

</mosaic_0001>

<llo_original>
// kernel: tpu_custom_call.1
$region0: #{tpu_custom_call.1}
  #allocation0 [shape = 'u32[]', space=smem, size = 0x4, offset = 0x4, fixed_abs, tag = 'smem constant byte address 0x4 - core index']
  #allocation1 [shape = 'u32[72,128]{1,0:T(1,128)}', space=vmem, size = 0x9000, scoped, tag = 'internal scratch']
  %s0 = inlined_call_operand.vmem [shape: bf16[2,24,8], index: 0, kind: input, shape index: {}]
  %s1 = inlined_call_operand.vmem [shape: bf16[8,128], index: 1, kind: input, shape index: {}]
  %s2 = inlined_call_operand.vmem [shape: f32[24,128], index: 2, kind: input, shape index: {}]
  %s3 = inlined_call_operand.hbm [shape: f32[2,24,128], index: 3, kind: output, shape index: {}]
  %s4 = sld [smem:[#allocation0]]
  $region45: #{tpu_custom_call.1} parent=0
    _
  %s6 = ssub.s32 1, %s4
  %s7 = scalar_select 0, %s6, %s4
  $region1: #{tpu_custom_call.1} parent=0
    #allocation2 [shape = 'u8[24576]{0}', space=vmem, size = 0x6000, scoped, tag = 'output window, operand 0']
    #allocation3 [shape = 's32[2]{0}', space=sflag, size = 0x8, scoped, tag = 'scoped memory for tpu_custom_call.1']
    %8 = vsyncpa [#allocation3], 0
    %s9 = scalar_lea.sflag [#allocation3], 1
    %10 = vsyncpa %s9, 0
    loop: start=0, step=1, limit=4
    $region2: #{tpu_custom_call.1} parent=1 // loop_pre_header
      _
    $region3: #{tpu_custom_call.1} parent=1 // loop_header
      %s12 = sphi 0, %s16
      %p13 = scmp.ge.s32.totalorder %s12, 4
      %s19 = sphi 0, %s31
      %s20 = sphi 0, %s27
      %s21 = sphi 0, %s19
      %s22 = sphi 0, %s20
      %s23 = sphi 0, %s21
      %s24 = sphi 0, %s22
      %s36 = sphi 0, %s38
      %s39 = sphi 0, %s36
      %s40 = sphi 0, %s39
      %s56 = sphi 0, %s40
      %s60 = sphi 0, %s60
      %s62 = sphi 0, %s60
      %s63 = sphi 0, %s62
      %s77 = sphi 0, %s63
      %s83 = sphi 0, %s85
      %s86 = sphi 0, %s83
      %s87 = sphi 0, %s86
      %s103 = sphi 0, %s87
      %s111 = sphi 0, %s113
      %s114 = sphi 0, %s111
      %s115 = sphi 0, %s114
      %s131 = sphi 0, %s115
    $region4: #{tpu_custom_call.1} parent=1 // loop_header_branch
      %15 = sbr.rel (%p13) target = $region8
    $region5: #{tpu_custom_call.1} parent=1 // loop_body
      %s17 = ssub.s32 %s12, 1
      %s18 = ssub.s32 %s12, 2
      %s25 = sadd.s32 1, %s20
      %p26 = scmp.ge.s32.totalorder %s25, 2
      %s27 = scalar_select %p26, 0, %s25
      %s28 = sadd.s32 1, %s19
      %s29 = scalar_select %p26, %s28, %s19
      %p30 = scmp.ge.s32.totalorder %s29, 1
      %s31 = scalar_select %p30, 0, %s29
      %s32 = ssub.s32 %s20, %s27
      %s33 = ssub.s32 %s19, %s31
      %s34 = sor.u32 %s32, %s33
      %p35 = scmp.eq.s32.totalorder %s34, 0
      %s37 = sadd.s32 %s36, 1
      %s38 = scalar_select %p35, %s36, %s37
      %p41 = pneg %p35
      %p42 = scmp.eq.s32.totalorder %s12, 1
      %p43 = por %p41, %p42
      %p44 = scmp.ne.s32.totalorder %s36, %s39
      %p45 = scmp.eq.s32.totalorder %s12, 0
      %p46 = por %p44, %p45
      %p47 = scmp.ne.s32.totalorder %s36, %s39
      %p48 = scmp.eq.s32.totalorder %s17, 1
      %p49 = por %p47, %p48
      %p50 = scmp.ne.s32.totalorder %s39, %s40
      %p51 = scmp.eq.s32.totalorder %s17, 0
      %p52 = por %p50, %p51
      %p53 = scmp.ne.s32.totalorder %s39, %s40
      %p54 = scmp.eq.s32.totalorder %s18, 1
      %p55 = por %p53, %p54
      %p57 = scmp.ne.s32.totalorder %s40, %s56
      %p58 = scmp.eq.s32.totalorder %s18, 0
      %p59 = por %p57, %p58
      %s61 = sadd.s32 %s60, 1
      %p64 = scmp.eq.s32.totalorder %s12, 1
      %p65 = scmp.ne.s32.totalorder %s60, %s62
      %p66 = scmp.eq.s32.totalorder %s12, 0
      %p67 = por %p65, %p66
      %p68 = scmp.ne.s32.totalorder %s60, %s62
      %p69 = scmp.eq.s32.totalorder %s17, 1
      %p70 = por %p68, %p69
      %p71 = scmp.ne.s32.totalorder %s62, %s63
      %p72 = scmp.eq.s32.totalorder %s17, 0
      %p73 = por %p71, %p72
      %p74 = scmp.ne.s32.totalorder %s62, %s63
      %p75 = scmp.eq.s32.totalorder %s18, 1
      %p76 = por %p74, %p75
      %p78 = scmp.ne.s32.totalorder %s63, %s77
      %p79 = scmp.eq.s32.totalorder %s18, 0
      %p80 = por %p78, %p79
      %s81 = ssub.s32 %s19, %s31
      %p82 = scmp.eq.s32.totalorder %s81, 0
      %s84 = sadd.s32 %s83, 1
      %s85 = scalar_select %p82, %s83, %s84
      %p88 = pneg %p82
      %p89 = scmp.eq.s32.totalorder %s12, 1
      %p90 = por %p88, %p89
      %p91 = scmp.ne.s32.totalorder %s83, %s86
      %p92 = scmp.eq.s32.totalorder %s12, 0
      %p93 = por %p91, %p92
      %p94 = scmp.ne.s32.totalorder %s83, %s86
      %p95 = scmp.eq.s32.totalorder %s17, 1
      %p96 = por %p94, %p95
      %p97 = scmp.ne.s32.totalorder %s86, %s87
      %p98 = scmp.eq.s32.totalorder %s17, 0
      %p99 = por %p97, %p98
      %p100 = scmp.ne.s32.totalorder %s86, %s87
      %p101 = scmp.eq.s32.totalorder %s18, 1
      %p102 = por %p100, %p101
      %p104 = scmp.ne.s32.totalorder %s87, %s103
      %p105 = scmp.eq.s32.totalorder %s18, 0
      %p106 = por %p104, %p105
      %s107 = ssub.s32 %s20, %s27
      %s108 = ssub.s32 %s19, %s31
      %s109 = sor.u32 %s107, %s108
      %p110 = scmp.eq.s32.totalorder %s109, 0
      %s112 = sadd.s32 %s111, 1
      %s113 = scalar_select %p110, %s111, %s112
      %p116 = pneg %p110
      %p117 = scmp.eq.s32.totalorder %s12, 1
      %p118 = por %p116, %p117
      %p119 = scmp.ne.s32.totalorder %s111, %s114
      %p120 = scmp.eq.s32.totalorder %s12, 0
      %p121 = por %p119, %p120
      %p122 = scmp.ne.s32.totalorder %s111, %s114
      %p123 = scmp.eq.s32.totalorder %s17, 1
      %p124 = por %p122, %p123
      %p125 = scmp.ne.s32.totalorder %s114, %s115
      %p126 = scmp.eq.s32.totalorder %s17, 0
      %p127 = por %p125, %p126
      %p128 = scmp.ne.s32.totalorder %s114, %s115
      %p129 = scmp.eq.s32.totalorder %s18, 1
      %p130 = por %p128, %p129
      %p132 = scmp.ne.s32.totalorder %s115, %s131
      %p133 = scmp.eq.s32.totalorder %s18, 0
      %p134 = por %p132, %p133
      %p135 = scmp.le.s32.totalorder 1, %s12
      %p136 = scmp.lt.s32.totalorder %s12, 3
      %p137 = pnand %p135, %p136
      %p138 = pneg %p137
      // Predicated region
      $region9: #{tpu_custom_call.1} parent=5 // pred_check
        _
      $region10: #{tpu_custom_call.1} parent=5 // pred_check_branch
        %140 = sbr.rel (%p137) target = $region12
      $region11: #{tpu_custom_call.1} parent=5 // pred_region
        %s141 = ssub.s32 %s12, 1
        // Predicated region
        $region13: #{tpu_custom_call.1} parent=11 // pred_check
          %p142 = pneg %p73
        $region14: #{tpu_custom_call.1} parent=11 // pred_check_branch
          %144 = sbr.rel (%p142) target = $region16
        $region15: #{tpu_custom_call.1} parent=11 // pred_region
          _
        $region16: #{tpu_custom_call.1} parent=11 // pred_fallthru
          _
        // Predicated region
        $region17: #{tpu_custom_call.1} parent=11 // pred_check
          %p145 = pneg %p99
        $region18: #{tpu_custom_call.1} parent=11 // pred_check_branch
          %147 = sbr.rel (%p145) target = $region20
        $region19: #{tpu_custom_call.1} parent=11 // pred_region
          %s148 = smul.u32 3, %s21
          %p149 = scmp.lt.s32.totalorder %s148, 2
          %s150 = scalar_select %p149, %s148, 2
          %s151 = smul.addr %s150, 8
          %s152 = scalar_lea.vmem %s2, %s151
          %s153 = smul.u32 3, %s21
        $region20: #{tpu_custom_call.1} parent=11 // pred_fallthru
          _
      $region12: #{tpu_custom_call.1} parent=5 // pred_fallthru
        _
      %p154 = scmp.lt.s32.totalorder %s12, 2
      // Predicated region
      $region21: #{tpu_custom_call.1} parent=5 // pred_check
        %p155 = pneg %p154
      $region22: #{tpu_custom_call.1} parent=5 // pred_check_branch
        %157 = sbr.rel (%p155) target = $region24
      $region23: #{tpu_custom_call.1} parent=5 // pred_region
        // Predicated region
        $region25: #{tpu_custom_call.1} parent=23 // pred_check
          %p158 = pneg %p46
        $region26: #{tpu_custom_call.1} parent=23 // pred_check_branch
          %160 = sbr.rel (%p158) target = $region28
        $region27: #{tpu_custom_call.1} parent=23 // pred_region
          %s161 = smul.u32 3, %s19
          %p162 = scmp.lt.s32.totalorder %s20, 1
          %s163 = scalar_select %p162, %s20, 1
          %p164 = scmp.lt.s32.totalorder %s161, 2
          %s165 = scalar_select %p164, %s161, 2
          %s166 = smul.addr %s163, 3
          %s167 = sadd.s32 %s165, %s166
          %s168 = smul.addr %s167, 4
          %s169 = scalar_lea.vmem %s0, %s168
          %s170 = smul.u32 3, %s19
        $region28: #{tpu_custom_call.1} parent=23 // pred_fallthru
          _
      $region24: #{tpu_custom_call.1} parent=5 // pred_fallthru
        _
      %p171 = scmp.le.s32.totalorder 1, %s12
      %p172 = scmp.lt.s32.totalorder %s12, 3
      %p173 = pnand %p171, %p172
      %p174 = pneg %p173
      // Predicated region
      $region29: #{tpu_custom_call.1} parent=5 // pred_check
        _
      $region30: #{tpu_custom_call.1} parent=5 // pred_check_branch
        %176 = sbr.rel (%p173) target = $region32
      $region31: #{tpu_custom_call.1} parent=5 // pred_region
        %s177 = ssub.s32 %s12, 1
        %s178 = smul.u32 3, %s21
        %p179 = scmp.lt.s32.totalorder %s22, 1
        %s180 = scalar_select %p179, %s22, 1
        %p181 = scmp.lt.s32.totalorder %s178, 2
        %s182 = scalar_select %p181, %s178, 2
        %s183 = smul.addr %s180, 3
        %s184 = sadd.s32 %s182, %s183
        %s185 = smul.addr %s184, 4
        %s186 = scalar_lea.vmem %s0, %s185
        %p187 = pneg %p52
        %p188 = pneg %p49
        %p189 = pneg %p73
        %p190 = pneg %p70
        %s191 = smul.u32 3, %s21
        %p192 = scmp.lt.s32.totalorder %s191, 2
        %s193 = scalar_select %p192, %s191, 2
        %s194 = smul.addr %s193, 8
        %s195 = scalar_lea.vmem %s2, %s194
        %p196 = pneg %p99
        %p197 = pneg %p96
        %p198 = pneg %p127
        %p199 = pneg %p124
        %s200 = sand.u32 %s114, 1
        %s201 = scalar_lea.sflag [#allocation3], %s200
        %s202 = sand.u32 %s114, 1
        %s203 = smul.addr %s202, 24
        %s204 = scalar_lea.vmem [#allocation2], %s203
        %s205 = smul.u32 3, %s21
        %p206 = scmp.lt.s32.totalorder %s22, 1
        %s207 = scalar_select %p206, %s22, 1
        %p208 = scmp.lt.s32.totalorder %s205, 2
        %s209 = scalar_select %p208, %s205, 2
        %s210 = smul.addr %s207, 3
        %s211 = sadd.s32 %s209, %s210
        %s212 = smul.addr %s211, 4
        %s213 = scalar_lea.vmem %s0, %s212
        %s214 = smul.u32 3, %s21
        %s215 = smul.u32 3, %s21
        %p216 = scmp.lt.s32.totalorder %s215, 2
        %s217 = scalar_select %p216, %s215, 2
        %s218 = smul.addr %s217, 8
        %s219 = scalar_lea.vmem %s2, %s218
        %s220 = smul.u32 3, %s21
        %s221 = smul.u32 3, %s21
        %v223 = vld [vmem:[%s213] sm:$0xf]
        %v224 = vld [vmem:[%s213 + $0x4] sm:$0xf]
        %v225 = vld [vmem:[%s213 + $0x8] sm:$0xf]
        %v226 = vld [vmem:[%s1] sm:$0xf]
        %v227 = vld [vmem:[%s219] sm:$0xff]
        %v228 = vld [vmem:[%s219 + $0x8] sm:$0xff]
        %v229 = vld [vmem:[%s219 + $0x10] sm:$0xff]
        %v233 = vunpack.c.l.b16 %v223
        %v234 = vunpack.c.l.b16 %v224
        %v235 = vunpack.c.l.b16 %v225
        %v236 = vpack.c.b16 %v234, %v233
        %v237 = vpack.c.b16 %v235, %v235
        %vm238 = vcmask 64512
        %v240 = vsel %vm238, %v236, 0
        %v243 = vsel %vm238, %v237, 0
        %vm245 = vcmask 1043456
        %v247 = vsel %vm245, %v226, 0
        %249 = vmatpush.bf16.msra.mxu0 0
        %250 = vmatpush.bf16.msra.mxu0 0
        %251 = vmatpush.bf16.msra.mxu0 0
        %252 = vmatpush.bf16.msra.mxu0 0
        %253 = vmatpush.bf16.msra.mxu0 0
        %254 = vmatpush.bf16.msra.mxu0 0
        %255 = vmatpush.bf16.msra.mxu0 0
        %256 = vmatpush.bf16.msra.mxu0 %v247
        %257 = vmatmul.bf16.gmra.mxu0 %v240
        %v258 = vpop.f32.mrf.mxu0
        %v259 = vadd.f32 %v227, %v258
        %v260 = vpop.f32.mrf.mxu0
        %v261 = vadd.f32 %v228, %v260
        %262 = vmatmul.bf16.gmra.mxu0 %v243
        %v263 = vpop.f32.mrf.mxu0
        %v264 = vadd.f32 %v229, %v263
        %v265 = vpop.f32.mrf.mxu0
        %266 = vdwg.mxu0
        %267 = vst [vmem:[%s204] sm:$0xff] %v259
        %268 = vst [vmem:[%s204 + $0x8] sm:$0xff] %v261
        %269 = vst [vmem:[%s204 + $0x10] sm:$0xff] %v264
        %s270 = sand.u32 %s114, 1
        %s271 = scalar_lea.sflag [#allocation3], %s270
        %s272 = sand.u32 %s114, 1
        %s273 = smul.addr %s272, 24
        %s274 = scalar_lea.vmem [#allocation2], %s273
        // Predicated region
        $region33: #{tpu_custom_call.1} parent=31 // pred_check
          %p275 = pneg %p124
        $region34: #{tpu_custom_call.1} parent=31 // pred_check_branch
          %277 = sbr.rel (%p275) target = $region36
        $region35: #{tpu_custom_call.1} parent=31 // pred_region
          %s278 = smul.u32 3, %s21
          %280 = vsyncadd %s271, 0
          %s281 = smul.addr %s22, 3
          %s282 = sadd.s32 %s278, %s281
          %s283 = smul.addr %s282, 8
          %s284 = scalar_lea.hbm %s3, %s283
          %s285 = sshll.u32 %s274, 4
          %s286 = int_to_ptr.vmem [resolvable:$true] %s285
          %s287 = sshll.u32 %s284, 4
          %s288 = int_to_ptr.hbm [resolvable:$true] %s287
          %293 = dma.vmem_to_hbm [thread:$0]  %s286, 384, %s288, %s271, 128, 128, 8
        $region36: #{tpu_custom_call.1} parent=31 // pred_fallthru
          _
      $region32: #{tpu_custom_call.1} parent=5 // pred_fallthru
        _
      %p294 = scmp.le.s32.totalorder 2, %s12
      // Predicated region
      $region37: #{tpu_custom_call.1} parent=5 // pred_check
        %p295 = pneg %p294
      $region38: #{tpu_custom_call.1} parent=5 // pred_check_branch
        %297 = sbr.rel (%p295) target = $region40
      $region39: #{tpu_custom_call.1} parent=5 // pred_region
        %s298 = ssub.s32 %s12, 2
        // Predicated region
        $region41: #{tpu_custom_call.1} parent=39 // pred_check
          %p299 = pneg %p130
        $region42: #{tpu_custom_call.1} parent=39 // pred_check_branch
          %301 = sbr.rel (%p299) target = $region44
        $region43: #{tpu_custom_call.1} parent=39 // pred_region
          %s302 = sand.u32 %s115, 1
          %s303 = scalar_lea.sflag [#allocation3], %s302
          %s304 = sand.u32 %s115, 1
          %s305 = smul.addr %s304, 24
          %s306 = scalar_lea.vmem [#allocation2], %s305
          %308 = dma.done %s303, 384
        $region44: #{tpu_custom_call.1} parent=39 // pred_fallthru
          _
      $region40: #{tpu_custom_call.1} parent=5 // pred_fallthru
        _
    $region6: #{tpu_custom_call.1} parent=1 // loop_footer
      %s16 = sadd.s32 1, %s12
    $region7: #{tpu_custom_call.1} parent=1 // loop_footer_branch
      %11 = sbr.rel target = $region3
    $region8: #{tpu_custom_call.1} parent=1 // loop_exit
      _
    %309 = vsyncpa [#allocation3], 1
    %s310 = scalar_lea.sflag [#allocation3], 1
    %311 = vsyncpa %s310, 1

</llo_original>
